<compile_context>
chip_gen: v7x
topology: tpu7x:2x2x1
jax: 0.10.0
libtpu: 0.0.40
codegen_flags: <defaults>
</compile_context>

<pallas_src>
import jax
import jax.numpy as jnp
from jax import lax
from jax.experimental import pallas as pl
from jax.experimental.pallas import tpu as pltpu


LANE = 128          # TPU lane width: feature dims are padded to a multiple of this
BATCH_ALIGN = 16    # bf16 sublane packing granularity for the batch tile


def _round_up(x, m):
    return ((x + m - 1) // m) * m


# ---------------------------------------------------------------------------
# Fused Pallas kernel: the whole MLP for one batch tile
# ---------------------------------------------------------------------------

def _make_fused_mlp_kernel(num_hidden, has_head):
    """Kernel refs: (x, w_0, s_0, ..., w_{H-1}, s_{H-1}, [w_head, b_head], o).

      x      : (B_TILE, D0_pad)        bf16 activations tile
      w_h    : (Dh_pad, Dh+1_pad)      bf16 BN-folded hidden weights (zero padded)
      s_h    : (1, Dh+1_pad)           f32 folded bias/shift
      w_head : (1, Dlast_pad)          bf16 head weight stored as a lane-dense row
      b_head : (1, 1)                  f32 head bias
      o      : (1, B_TILE) f32 (head)  or (B_TILE, Dlast_pad) f32 (no head)
    """

    def kernel(*refs):
        x_ref = refs[0]
        o_ref = refs[-1]
        x = x_ref[...]                                   # bf16 (B, D0_pad)
        y = None
        for layer in range(num_hidden):
            w = refs[1 + 2 * layer][...]                 # bf16 (Din_pad, Dout_pad)
            s = refs[2 + 2 * layer][...]                 # f32  (1, Dout_pad)
            # Single fused epilogue per layer: f32 MXU accumulate, folded
            # BN/bias add, ReLU, ONE downcast (keeps VPU work minimal on v5e).
            y = jnp.maximum(
                jnp.dot(x, w, preferred_element_type=jnp.float32) + s, 0.0)
            x = y.astype(w.dtype)                        # bf16 for the next MXU pass
        if has_head:
            w = refs[1 + 2 * num_hidden][...]            # bf16 (1, Dlast_pad)
            b = refs[2 + 2 * num_hidden][...]            # f32  (1, 1)
            # Lane-dense head: contract over the feature dim of both operands
            # (trans-B matmul) so the result is a (1, B_TILE) row -> unmasked,
            # lane-dense output stores instead of a 128-padded (B_TILE, 128) tile.
            head = lax.dot_general(
                w, x, (((1,), (1,)), ((), ())),
                preferred_element_type=jnp.float32) + b
            o_ref[...] = head.astype(o_ref.dtype)
        else:
            out = y if y is not None else x.astype(jnp.float32)
            o_ref[...] = out.astype(o_ref.dtype)

    return kernel


# ---------------------------------------------------------------------------
# Batch-tile selection
# ---------------------------------------------------------------------------

def _choose_b_tile(batch, requested):
    requested = max(BATCH_ALIGN, _round_up(requested, BATCH_ALIGN))
    if batch <= requested:
        # One tile sized to the batch: small/awkward batches (e.g. 260) don't
        # round up to a full `requested`-row tile.
        return _round_up(batch, BATCH_ALIGN)
    # Several tiles: keep >= 2 grid steps so both v7x TensorCores get work, and
    # keep the tile a multiple of 128 so the lane-dense (1, b_tile) head output
    # block stays (8,128)-legal across grid steps.
    num_tiles = max(2, pl.cdiv(batch, requested))
    return max(LANE, _round_up(pl.cdiv(batch, num_tiles), LANE))


# ---------------------------------------------------------------------------
# Wrapper: (optionally) pad, tile the batch, call the fused kernel once
# ---------------------------------------------------------------------------

def mlp_forward(x, fused, b_tile=512, weight_buffer_count=None, x_buffer_count=None):
    """Run the fused MLP. `fused` comes from fold_and_pad_params().

    b_tile:              requested batch tile (>=512 amortizes per-grid-step
                         overhead; VMEM cost of the x tile is tiny).
    weight_buffer_count: set to 1 on v7x (64 MiB VMEM) with production widths
                         to stop double-buffering the never-changing weights.
    x_buffer_count:      set to 3 if a trace shows exposed input DMA.
    """
    hidden_w = fused["hidden_weights"]
    hidden_s = fused["hidden_shifts"]
    head_w = fused["head_weight"]
    head_b = fused["head_bias"]
    has_head = head_w is not None
    num_hidden = len(hidden_w)
    out_dim = fused["output_dim"]

    batch, din = x.shape
    if num_hidden:
        din_pad = hidden_w[0].shape[0]
        dlast_pad = hidden_w[-1].shape[1]
    else:
        din_pad = head_w.shape[1] if has_head else _round_up(din, LANE)
        dlast_pad = din_pad
    compute_dtype = (hidden_w[0] if num_hidden else head_w).dtype

    bt = _choose_b_tile(batch, b_tile)
    num_tiles = pl.cdiv(batch, bt)
    padded_batch = num_tiles * bt

    # Input staging. Fast path: hand x straight to the kernel (no extra HBM
    # round-trip). Otherwise ONE fused pad/cast op; pad feature columns are
    # exactly zero so the zero-padded weight rows cannot inject NaN/Inf.
    if padded_batch == batch and din == din_pad and x.dtype == compute_dtype:
        xp = x
    elif padded_batch == batch and din == din_pad:
        xp = x.astype(compute_dtype)
    else:
        xp = jnp.pad(x.astype(compute_dtype),
                     ((0, padded_batch - batch), (0, din_pad - din)))

    kernel = _make_fused_mlp_kernel(num_hidden, has_head)

    def _spec(shape, index_map, buffer_count=None):
        if buffer_count is not None:
            try:
                return pl.BlockSpec(shape, index_map,
                                    pipeline_mode=pl.Buffered(buffer_count=buffer_count))
            except Exception:
                pass  # older/newer API: fall back to default (double) buffering
        return pl.BlockSpec(shape, index_map)

    in_specs = [_spec((bt, din_pad), lambda i: (i, 0), x_buffer_count)]
    flat_params = []
    for w, s in zip(hidden_w, hidden_s):
        # Constant index maps -> weights/shifts stay VMEM-resident across tiles.
        in_specs.append(_spec(w.shape, lambda i: (0, 0), weight_buffer_count))
        in_specs.append(_spec(s.shape, lambda i: (0, 0), weight_buffer_count))
        flat_params.extend((w, s))
    if has_head:
        in_specs.append(_spec(head_w.shape, lambda i: (0, 0), weight_buffer_count))
        in_specs.append(_spec(head_b.shape, lambda i: (0, 0), weight_buffer_count))
        flat_params.extend((head_w, head_b))

    if has_head:
        out_shape = jax.ShapeDtypeStruct((1, padded_batch), jnp.float32)
        out_specs = pl.BlockSpec((1, bt), lambda i: (0, i))
    else:
        out_shape = jax.ShapeDtypeStruct((padded_batch, dlast_pad), jnp.float32)
        out_specs = pl.BlockSpec((bt, dlast_pad), lambda i: (i, 0))

    # --- explicit VMEM budget (v7x: 64 MiB physical; v5e/v6e: 128 MiB) ------
    bytesz = lambda a: int(a.size) * a.dtype.itemsize
    param_bytes = sum(bytesz(p) for p in flat_params)
    x_tile_bytes = bt * din_pad * jnp.dtype(compute_dtype).itemsize
    out_tile_bytes = bt * 4 if has_head else bt * dlast_pad * 4
    max_width = max([w.shape[1] for w in hidden_w] + [din_pad])
    act_bytes = bt * max_width * 4                     # f32 intermediates
    wbuf = 1 if weight_buffer_count == 1 else 2
    xbuf = x_buffer_count if x_buffer_count else 2
    vmem_need = (wbuf * param_bytes + xbuf * x_tile_bytes + 2 * out_tile_bytes
                 + 2 * act_bytes + (4 << 20))
    try:
        phys = getattr(pltpu.get_tpu_info(), "vmem_capacity_bytes", None)
    except Exception:
        phys = None
    cap = (phys - (8 << 20)) if phys else (56 << 20)   # unknown -> assume v7x-sized
    vmem_limit = int(min(max(vmem_need, 32 << 20), max(cap, 32 << 20), 112 << 20))

    flops = 2 * padded_batch * sum(int(w.shape[0]) * int(w.shape[1]) for w in hidden_w)
    if has_head:
        flops += 2 * padded_batch * int(head_w.shape[1])
    out_cols = 1 if has_head else dlast_pad
    bytes_accessed = bytesz(xp) + param_bytes + padded_batch * out_cols * 4

    out = pl.pallas_call(
        kernel,
        out_shape=out_shape,
        grid=(num_tiles,),
        in_specs=in_specs,
        out_specs=out_specs,
        compiler_params=pltpu.CompilerParams(
            dimension_semantics=("parallel",),        # megacore-shardable on v7x
            vmem_limit_bytes=vmem_limit,
        ),
        cost_estimate=pl.CostEstimate(
            flops=int(flops), transcendentals=0, bytes_accessed=int(bytes_accessed)),
    )(xp, *flat_params)

    if has_head:
        return out[0, :batch].reshape(batch, 1).astype(jnp.float32)
    return out[:batch, :out_dim].astype(jnp.float32)


# ---------------------------------------------------------------------------
# Parameter construction (PyTorch-style init) + BN fold + lane padding
# ---------------------------------------------------------------------------

def init_mlp_params(key, input_dim, embed_dims, output_layer=True):
    """torch.nn.Linear default init (U(-1/sqrt(fan_in), 1/sqrt(fan_in))) and
    torch.nn.BatchNorm1d defaults (gamma=1, beta=0, mean=0, var=1, eps=1e-5)."""
    params = {"hidden": [], "output": None}
    eps = 1e-5
    din = input_dim
    for dout in embed_dims:
        key, kw, kb = jax.random.split(key, 3)
        bound = 1.0 / jnp.sqrt(float(din))
        w = jax.random.uniform(kw, (din, dout), jnp.float32, -bound, bound)
        b = jax.random.uniform(kb, (1, dout), jnp.float32, -bound, bound)
        gamma = jnp.ones((1, dout), jnp.float32)
        beta = jnp.zeros((1, dout), jnp.float32)
        running_mean = jnp.zeros((1, dout), jnp.float32)
        running_var = jnp.ones((1, dout), jnp.float32)
        scale = gamma / jnp.sqrt(running_var + eps)
        shift = beta - running_mean * scale
        params["hidden"].append((w, b, scale, shift))
        din = dout
    if output_layer:
        key, kw, kb = jax.random.split(key, 3)
        bound = 1.0 / jnp.sqrt(float(din))
        w = jax.random.uniform(kw, (din, 1), jnp.float32, -bound, bound)
        b = jax.random.uniform(kb, (1, 1), jnp.float32, -bound, bound)
        params["output"] = (w, b)
    return params


def fold_and_pad_params(params, input_dim, compute_dtype=jnp.bfloat16,
                        lane_multiple=LANE):
    """Fold BN + bias into the Linear weights, zero-pad feature dims to
    `lane_multiple`, cast weights to the MXU compute dtype (bf16).

    lane_multiple=128 matches the TPU lane width and v5e's 128x128 MXU; on
    v6e/v7x (256-wide MXUs) use 256 for hidden widths > 128 once the kernel is
    MXU-bound — at DeepFM widths it is usually grid/HBM-bound, so 128 is fine.
    """
    hidden_w, hidden_s = [], []
    din = input_dim
    for (w, b, scale, shift) in params["hidden"]:
        dout = w.shape[1]
        w_f = w * scale                       # fold BN scale into weights
        s_f = b * scale + shift               # fold bias through BN
        din_pad = _round_up(din, lane_multiple)
        dout_pad = _round_up(dout, lane_multiple)
        wp = jnp.zeros((din_pad, dout_pad), jnp.float32).at[:din, :dout].set(w_f)
        sp = jnp.zeros((1, dout_pad), jnp.float32).at[:, :dout].set(s_f)
        hidden_w.append(wp.astype(compute_dtype))
        hidden_s.append(sp)                   # shift stays f32 (post-accumulate add)
        din = dout
    head_w = head_b = None
    out_dim = din
    if params["output"] is not None:
        w, b = params["output"]               # (din, 1), (1, 1)
        din_pad = _round_up(din, lane_multiple)
        # Head weight stored as a lane-dense ROW (1, din_pad): the kernel
        # contracts it against the feature dim and emits a (1, b_tile) row, so
        # the 1-wide head never produces a 128-padded output tile.
        wp = jnp.zeros((1, din_pad), jnp.float32).at[0, :din].set(w[:, 0])
        head_w = wp.astype(compute_dtype)
        head_b = b.astype(jnp.float32).reshape(1, 1)
        out_dim = 1
    return {
        "hidden_weights": hidden_w,
        "hidden_shifts": hidden_s,
        "head_weight": head_w,
        "head_bias": head_b,
        "input_dim": input_dim,
        "output_dim": out_dim,
    }


# ---------------------------------------------------------------------------
# References (plain JAX) for sanity checks
# ---------------------------------------------------------------------------

def mlp_reference_folded(x, fused):
    """Reference using the identical folded/padded bf16 weights, f32 accum."""
    hidden_w, hidden_s = fused["hidden_weights"], fused["hidden_shifts"]
    head_w, head_b = fused["head_weight"], fused["head_bias"]
    batch, din = x.shape
    cdt = (hidden_w[0] if hidden_w else head_w).dtype
    din_pad = hidden_w[0].shape[0] if hidden_w else head_w.shape[1]
    h = jnp.zeros((batch, din_pad), cdt).at[:, :din].set(x.astype(cdt))
    y = None
    for w, s in zip(hidden_w, hidden_s):
        y = jnp.maximum(jnp.dot(h, w, preferred_element_type=jnp.float32) + s, 0.0)
        h = y.astype(cdt)
    if head_w is not None:
        out = jnp.dot(h, head_w.T, preferred_element_type=jnp.float32) + head_b
        return out.astype(jnp.float32)
    out = y if y is not None else h.astype(jnp.float32)
    return out[:, :fused["output_dim"]].astype(jnp.float32)


def mlp_reference_f32(x, params):
    """Full-precision reference of the original (unfolded) module, eval mode."""
    h = x
    for (w, b, scale, shift) in params["hidden"]:
        h = jnp.maximum((h @ w + b) * scale + shift, 0.0)
    if params["output"] is not None:
        w, b = params["output"]
        h = h @ w + b
    return h


if __name__ == "__main__":
    key = jax.random.PRNGKey(0)
    key, kx, kp = jax.random.split(key, 3)

    batch = 8
    input_dim = 32
    embed_dims = (64, 32)
    dropout = 0.2   # eval-mode identity; TODO(synk): training-mode dropout/BN not implemented

    x = jax.random.normal(kx, (batch, input_dim), jnp.float32)
    raw_params = init_mlp_params(kp, input_dim, embed_dims, output_layer=True)
    fused = fold_and_pad_params(raw_params, input_dim, compute_dtype=jnp.bfloat16)

    out = jax.block_until_ready(mlp_forward(x, fused))
    assert out.shape == (batch, 1), out.shape

    ref_folded = mlp_reference_folded(x, fused)
    assert jnp.allclose(out, ref_folded, atol=1e-2, rtol=1e-2), (
        float(jnp.max(jnp.abs(out - ref_folded))))

    ref_f32 = mlp_reference_f32(x, raw_params)
    assert jnp.allclose(out, ref_f32, atol=5e-2, rtol=5e-2), (
        float(jnp.max(jnp.abs(out - ref_f32))))

    # Multi-tile path: several grid steps, lane-dense (1, b_tile) output blocks,
    # ragged batch handled by a single fused pad op.
    key, kx2 = jax.random.split(key)
    x2 = jax.random.normal(kx2, (300, input_dim), jnp.float32)
    out2 = jax.block_until_ready(mlp_forward(x2, fused, b_tile=128))
    ref2 = mlp_reference_folded(x2, fused)
    assert out2.shape == (300, 1), out2.shape
    assert jnp.allclose(out2, ref2, atol=1e-2, rtol=1e-2), (
        float(jnp.max(jnp.abs(out2 - ref2))))

    # output_layer=False variant (last op is ReLU'd hidden layer).
    raw_nh = init_mlp_params(kp, input_dim, (64,), output_layer=False)
    fused_nh = fold_and_pad_params(raw_nh, input_dim)
    out3 = jax.block_until_ready(mlp_forward(x, fused_nh))
    ref3 = mlp_reference_folded(x, fused_nh)
    assert out3.shape == (batch, 64), out3.shape
    assert jnp.allclose(out3, ref3, atol=1e-2, rtol=1e-2), (
        float(jnp.max(jnp.abs(out3 - ref3))))

    print("KERNEL_OK")
</pallas_src>

<mosaic_0001>
module attributes {stable_mosaic.version = 11 : i64} {
  func.func @kernel(%arg0: i32, %arg1: memref<16x128xbf16, #tpu.memory_space<vmem>>, %arg2: memref<128x128xbf16, #tpu.memory_space<vmem>>, %arg3: memref<1x128xf32, #tpu.memory_space<vmem>>, %arg4: memref<128x128xbf16, #tpu.memory_space<vmem>>, %arg5: memref<1x128xf32, #tpu.memory_space<vmem>>, %arg6: memref<1x128xbf16, #tpu.memory_space<vmem>>, %arg7: memref<1x1xf32, #tpu.memory_space<vmem>>, %arg8: memref<1x16xf32, #tpu.memory_space<vmem>>) attributes {dimension_semantics = [#tpu.dimension_semantics<parallel>], iteration_bounds = array<i64: 1>, scalar_prefetch = 0 : i64, scratch_operands = 0 : i64, tpu.core_type = #tpu.core_type<tc>, window_params = [{transform_indices = @transform_0, window_bounds = array<i64: 16, 128>}, {pipeline_mode = #tpu.pipeline_mode<synchronous>, transform_indices = @transform_1, window_bounds = array<i64: 128, 128>}, {pipeline_mode = #tpu.pipeline_mode<synchronous>, transform_indices = @transform_2, window_bounds = array<i64: 1, 128>}, {pipeline_mode = #tpu.pipeline_mode<synchronous>, transform_indices = @transform_3, window_bounds = array<i64: 128, 128>}, {pipeline_mode = #tpu.pipeline_mode<synchronous>, transform_indices = @transform_4, window_bounds = array<i64: 1, 128>}, {pipeline_mode = #tpu.pipeline_mode<synchronous>, transform_indices = @transform_5, window_bounds = array<i64: 1, 128>}, {pipeline_mode = #tpu.pipeline_mode<synchronous>, transform_indices = @transform_6, window_bounds = array<i64: 1, 1>}, {transform_indices = @transform_7, window_bounds = array<i64: 1, 16>}]} {
    %c0 = arith.constant 0 : index
    %c0_0 = arith.constant 0 : index
    %0 = vector.load %arg1[%c0, %c0_0] : memref<16x128xbf16, #tpu.memory_space<vmem>>, vector<16x128xbf16>
    %c0_1 = arith.constant 0 : index
    %c0_2 = arith.constant 0 : index
    %1 = vector.load %arg2[%c0_1, %c0_2] : memref<128x128xbf16, #tpu.memory_space<vmem>>, vector<128x128xbf16>
    %c0_3 = arith.constant 0 : index
    %c0_4 = arith.constant 0 : index
    %2 = vector.load %arg3[%c0_3, %c0_4] : memref<1x128xf32, #tpu.memory_space<vmem>>, vector<1x128xf32>
    %cst = arith.constant dense<0.000000e+00> : vector<16x128xf32>
    %3 = tpu.matmul %0, %1, %cst {dimension_numbers = #tpu.dot_dimension_numbers<[1], [0], [0], [1], [0, 0, 1, 1], [], []>} : vector<16x128xbf16>, vector<128x128xbf16>, vector<16x128xf32> -> vector<16x128xf32>
    %4 = vector.broadcast %2 : vector<1x128xf32> to vector<16x128xf32>
    %5 = arith.addf %3, %4 : vector<16x128xf32>
    %cst_5 = arith.constant 0.000000e+00 : f32
    %6 = vector.broadcast %cst_5 : f32 to vector<16x128xf32>
    %7 = arith.maximumf %5, %6 : vector<16x128xf32>
    %8 = arith.truncf %7 : vector<16x128xf32> to vector<16x128xbf16>
    %c0_6 = arith.constant 0 : index
    %c0_7 = arith.constant 0 : index
    %9 = vector.load %arg4[%c0_6, %c0_7] : memref<128x128xbf16, #tpu.memory_space<vmem>>, vector<128x128xbf16>
    %c0_8 = arith.constant 0 : index
    %c0_9 = arith.constant 0 : index
    %10 = vector.load %arg5[%c0_8, %c0_9] : memref<1x128xf32, #tpu.memory_space<vmem>>, vector<1x128xf32>
    %cst_10 = arith.constant dense<0.000000e+00> : vector<16x128xf32>
    %11 = tpu.matmul %8, %9, %cst_10 {dimension_numbers = #tpu.dot_dimension_numbers<[1], [0], [0], [1], [0, 0, 1, 1], [], []>} : vector<16x128xbf16>, vector<128x128xbf16>, vector<16x128xf32> -> vector<16x128xf32>
    %12 = vector.broadcast %10 : vector<1x128xf32> to vector<16x128xf32>
    %13 = arith.addf %11, %12 : vector<16x128xf32>
    %cst_11 = arith.constant 0.000000e+00 : f32
    %14 = vector.broadcast %cst_11 : f32 to vector<16x128xf32>
    %15 = arith.maximumf %13, %14 : vector<16x128xf32>
    %16 = arith.truncf %15 : vector<16x128xf32> to vector<16x128xbf16>
    %c0_12 = arith.constant 0 : index
    %c0_13 = arith.constant 0 : index
    %17 = vector.load %arg6[%c0_12, %c0_13] : memref<1x128xbf16, #tpu.memory_space<vmem>>, vector<1x128xbf16>
    %c0_14 = arith.constant 0 : index
    %c0_15 = arith.constant 0 : index
    %18 = vector.load %arg7[%c0_14, %c0_15] : memref<1x1xf32, #tpu.memory_space<vmem>>, vector<1x1xf32>
    %cst_16 = arith.constant dense<0.000000e+00> : vector<1x16xf32>
    %19 = tpu.matmul %17, %16, %cst_16 {dimension_numbers = #tpu.dot_dimension_numbers<[1], [1], [0], [0], [0, 0, 1, 0], [], []>} : vector<1x128xbf16>, vector<16x128xbf16>, vector<1x16xf32> -> vector<1x16xf32>
    %20 = vector.broadcast %18 : vector<1x1xf32> to vector<1x16xf32>
    %21 = arith.addf %19, %20 : vector<1x16xf32>
    %c0_17 = arith.constant 0 : index
    %c0_18 = arith.constant 0 : index
    %22 = vector.load %arg8[%c0_17, %c0_18] : memref<1x16xf32, #tpu.memory_space<vmem>>, vector<1x16xf32>
    tpu.vector_store %arg8[%c0_17, %c0_18], %21 {strides = array<i32>} : memref<1x16xf32, #tpu.memory_space<vmem>>, vector<1x16xf32>,
    return
  }
  func.func @transform_0(%arg0: i32) -> (i32, i32) {
    %c0_i32 = arith.constant 0 : i32
    %c0_i32_0 = arith.constant 0 : i32
    return %arg0, %c0_i32 : i32, i32
  }
  func.func @transform_1(%arg0: i32) -> (i32, i32) {
    %c0_i32 = arith.constant 0 : i32
    %c0_i32_0 = arith.constant 0 : i32
    %c0_i32_1 = arith.constant 0 : i32
    return %c0_i32, %c0_i32_0 : i32, i32
  }
  func.func @transform_2(%arg0: i32) -> (i32, i32) {
    %c0_i32 = arith.constant 0 : i32
    %c0_i32_0 = arith.constant 0 : i32
    %c0_i32_1 = arith.constant 0 : i32
    return %c0_i32, %c0_i32_0 : i32, i32
  }
  func.func @transform_3(%arg0: i32) -> (i32, i32) {
    %c0_i32 = arith.constant 0 : i32
    %c0_i32_0 = arith.constant 0 : i32
    %c0_i32_1 = arith.constant 0 : i32
    return %c0_i32, %c0_i32_0 : i32, i32
  }
  func.func @transform_4(%arg0: i32) -> (i32, i32) {
    %c0_i32 = arith.constant 0 : i32
    %c0_i32_0 = arith.constant 0 : i32
    %c0_i32_1 = arith.constant 0 : i32
    return %c0_i32, %c0_i32_0 : i32, i32
  }
  func.func @transform_5(%arg0: i32) -> (i32, i32) {
    %c0_i32 = arith.constant 0 : i32
    %c0_i32_0 = arith.constant 0 : i32
    %c0_i32_1 = arith.constant 0 : i32
    return %c0_i32, %c0_i32_0 : i32, i32
  }
  func.func @transform_6(%arg0: i32) -> (i32, i32) {
    %c0_i32 = arith.constant 0 : i32
    %c0_i32_0 = arith.constant 0 : i32
    %c0_i32_1 = arith.constant 0 : i32
    return %c0_i32, %c0_i32_0 : i32, i32
  }
  func.func @transform_7(%arg0: i32) -> (i32, i32) {
    %c0_i32 = arith.constant 0 : i32
    %c0_i32_0 = arith.constant 0 : i32
    return %c0_i32, %arg0 : i32, i32
  }
}

</mosaic_0001>

<llo_original>
// kernel: tpu_custom_call.1
$region0: #{tpu_custom_call.1}
  #allocation0 [shape = 'u32[]', space=smem, size = 0x4, offset = 0x4, fixed_abs, tag = 'smem constant byte address 0x4 - core index']
  #allocation1 [shape = 'u32[144,128]{1,0:T(1,128)}', space=vmem, size = 0x12000, scoped, tag = 'internal scratch']
  #allocation2 [shape = 'f32[1,1]{1,0:T(1,128)S(1)}', space=vmem, size = 0x200, scoped, tag = 'scoped memory for tpu_custom_call.1']
  %s0 = inlined_call_operand.hbm [shape: bf16[16,128], index: 0, kind: input, shape index: {}]
  %s1 = inlined_call_operand.hbm [shape: bf16[128,128], index: 1, kind: input, shape index: {}]
  %s2 = inlined_call_operand.vmem [shape: f32[1,128], index: 2, kind: input, shape index: {}]
  %s3 = inlined_call_operand.hbm [shape: bf16[128,128], index: 3, kind: input, shape index: {}]
  %s4 = inlined_call_operand.vmem [shape: f32[1,128], index: 4, kind: input, shape index: {}]
  %s5 = inlined_call_operand.vmem [shape: bf16[1,128], index: 5, kind: input, shape index: {}]
  %s6 = inlined_call_operand.<no memory space> [shape: f32[1,1], index: 6, kind: input, shape index: {}]
  %s7 = inlined_call_operand.hbm [shape: f32[1,16], index: 7, kind: output, shape index: {}]
  %s8 = sld [smem:[#allocation0]]
  $region50: #{tpu_custom_call.1} parent=0
    _
  %s10 = ssub.s32 1, %s8
  %s11 = scalar_select 0, %s10, %s8
  %v12 = vstv %s6
  %13 = vst [vmem:[#allocation2] sm:$0x1] %v12
  $region1: #{tpu_custom_call.1} parent=0
    #allocation3 [shape = 'u8[4096]{0}', space=vmem, size = 0x1000, scoped, tag = 'input window, operand 0, single buffered']
    #allocation4 [shape = 's32[1]{0}', space=sflag, size = 0x4, scoped, tag = 'scoped memory for tpu_custom_call.1']
    #allocation5 [shape = 's32[1]{0}', space=sflag, size = 0x4, scoped, tag = 'scoped memory for tpu_custom_call.1']
    #allocation6 [shape = 'u8[32768]{0}', space=vmem, size = 0x8000, scoped, tag = 'input window, operand 1, single buffered']
    #allocation7 [shape = 's32[1]{0}', space=sflag, size = 0x4, scoped, tag = 'scoped memory for tpu_custom_call.1']
    #allocation8 [shape = 'u8[32768]{0}', space=vmem, size = 0x8000, scoped, tag = 'input window, operand 3, single buffered']
    #allocation9 [shape = 'u8[512]{0}', space=vmem, size = 0x400, scoped, tag = 'output window, operand 0, single buffered']
    %14 = vsyncpa [#allocation4], 0
    %15 = vsyncpa [#allocation7], 0
    %16 = vsyncpa [#allocation5], 0
    // Predicated region
    $region2: #{tpu_custom_call.1} parent=1 // pred_check
      _
    $region3: #{tpu_custom_call.1} parent=1 // pred_check_branch
      %18 = sbr.rel (0) target = $region5
    $region4: #{tpu_custom_call.1} parent=1 // pred_region
      %s20 = ssub.s32 128, 128
      %21 = vsyncadd [#allocation4], %s20
      %s22 = sshll.u32 [#allocation3], 4
      %s23 = int_to_ptr.vmem [resolvable:$true] %s22
      %28 = dma.hbm_to_vmem [thread:$0]  %s0, 128, %s23, [#allocation4], 64, 64, 4
    $region5: #{tpu_custom_call.1} parent=1 // pred_fallthru
      _
    // Predicated region
    $region6: #{tpu_custom_call.1} parent=1 // pred_check
      _
    $region7: #{tpu_custom_call.1} parent=1 // pred_check_branch
      %30 = sbr.rel (0) target = $region9
    $region8: #{tpu_custom_call.1} parent=1 // pred_region
      %s32 = ssub.s32 1024, 1024
      %33 = vsyncadd [#allocation7], %s32
      %s34 = sshll.u32 [#allocation6], 4
      %s35 = int_to_ptr.vmem [resolvable:$true] %s34
      %40 = dma.hbm_to_vmem [thread:$0]  %s1, 1024, %s35, [#allocation7], 64, 64, 4
    $region9: #{tpu_custom_call.1} parent=1 // pred_fallthru
      _
    // Predicated region
    $region10: #{tpu_custom_call.1} parent=1 // pred_check
      _
    $region11: #{tpu_custom_call.1} parent=1 // pred_check_branch
      %42 = sbr.rel (0) target = $region13
    $region12: #{tpu_custom_call.1} parent=1 // pred_region
      _
    $region13: #{tpu_custom_call.1} parent=1 // pred_fallthru
      _
    // Predicated region
    $region14: #{tpu_custom_call.1} parent=1 // pred_check
      _
    $region15: #{tpu_custom_call.1} parent=1 // pred_check_branch
      %44 = sbr.rel (0) target = $region17
    $region16: #{tpu_custom_call.1} parent=1 // pred_region
      %s46 = ssub.s32 1024, 1024
      %47 = vsyncadd [#allocation7], %s46
      %s48 = sshll.u32 [#allocation8], 4
      %s49 = int_to_ptr.vmem [resolvable:$true] %s48
      %54 = dma.hbm_to_vmem [thread:$0]  %s3, 1024, %s49, [#allocation7], 64, 64, 4
    $region17: #{tpu_custom_call.1} parent=1 // pred_fallthru
      _
    // Predicated region
    $region18: #{tpu_custom_call.1} parent=1 // pred_check
      _
    $region19: #{tpu_custom_call.1} parent=1 // pred_check_branch
      %56 = sbr.rel (0) target = $region21
    $region20: #{tpu_custom_call.1} parent=1 // pred_region
      _
    $region21: #{tpu_custom_call.1} parent=1 // pred_fallthru
      _
    // Predicated region
    $region22: #{tpu_custom_call.1} parent=1 // pred_check
      _
    $region23: #{tpu_custom_call.1} parent=1 // pred_check_branch
      %58 = sbr.rel (0) target = $region25
    $region24: #{tpu_custom_call.1} parent=1 // pred_region
      _
    $region25: #{tpu_custom_call.1} parent=1 // pred_fallthru
      _
    // Predicated region
    $region26: #{tpu_custom_call.1} parent=1 // pred_check
      _
    $region27: #{tpu_custom_call.1} parent=1 // pred_check_branch
      %60 = sbr.rel (0) target = $region29
    $region28: #{tpu_custom_call.1} parent=1 // pred_region
      _
    $region29: #{tpu_custom_call.1} parent=1 // pred_fallthru
      _
    // Predicated region
    $region30: #{tpu_custom_call.1} parent=1 // pred_check
      _
    $region31: #{tpu_custom_call.1} parent=1 // pred_check_branch
      %62 = sbr.rel (0) target = $region33
    $region32: #{tpu_custom_call.1} parent=1 // pred_region
      %63 = dma.done [#allocation4], 128
    $region33: #{tpu_custom_call.1} parent=1 // pred_fallthru
      _
    // Predicated region
    $region34: #{tpu_custom_call.1} parent=1 // pred_check
      _
    $region35: #{tpu_custom_call.1} parent=1 // pred_check_branch
      %65 = sbr.rel (0) target = $region37
    $region36: #{tpu_custom_call.1} parent=1 // pred_region
      %66 = dma.done [#allocation7], 1024
    $region37: #{tpu_custom_call.1} parent=1 // pred_fallthru
      _
    // Predicated region
    $region38: #{tpu_custom_call.1} parent=1 // pred_check
      _
    $region39: #{tpu_custom_call.1} parent=1 // pred_check_branch
      %68 = sbr.rel (0) target = $region41
    $region40: #{tpu_custom_call.1} parent=1 // pred_region
      %69 = dma.done [#allocation7], 1024
    $region41: #{tpu_custom_call.1} parent=1 // pred_fallthru
      _
    %v71 = vld [vmem:[#allocation3] sm:$0xf]
    %v72 = vld [vmem:[#allocation3 + $0x4] sm:$0xf]
    %v73 = vld [vmem:[#allocation6] sm:$0xf]
    %v74 = vld [vmem:[#allocation6 + $0x4] sm:$0xf]
    %v75 = vld [vmem:[#allocation6 + $0x8] sm:$0xf]
    %v76 = vld [vmem:[#allocation6 + $0xc] sm:$0xf]
    %v77 = vld [vmem:[#allocation6 + $0x10] sm:$0xf]
    %v78 = vld [vmem:[#allocation6 + $0x14] sm:$0xf]
    %v79 = vld [vmem:[#allocation6 + $0x18] sm:$0xf]
    %v80 = vld [vmem:[#allocation6 + $0x1c] sm:$0xf]
    %v81 = vld [vmem:[#allocation6 + $0x20] sm:$0xf]
    %v82 = vld [vmem:[#allocation6 + $0x24] sm:$0xf]
    %v83 = vld [vmem:[#allocation6 + $0x28] sm:$0xf]
    %v84 = vld [vmem:[#allocation6 + $0x2c] sm:$0xf]
    %v85 = vld [vmem:[#allocation6 + $0x30] sm:$0xf]
    %v86 = vld [vmem:[#allocation6 + $0x34] sm:$0xf]
    %v87 = vld [vmem:[#allocation6 + $0x38] sm:$0xf]
    %v88 = vld [vmem:[#allocation6 + $0x3c] sm:$0xf]
    %v89 = vld [vmem:[%s2] sm:$0x1]
    %v91 = vlaneseq
    %v92 = vshrl.u32 %v91, 7
    %v93 = vsub.s32 0, %v92
    %v94 = vrot.slane %v89, %v93
    %v98 = vunpack.c.l.b16 %v71
    %v99 = vunpack.c.l.b16 %v72
    %v100 = vpack.c.b16 %v99, %v98
    %v118 = vunpack.c.l.b16 %v73
    %v119 = vunpack.c.l.b16 %v74
    %v120 = vunpack.c.l.b16 %v75
    %v121 = vunpack.c.l.b16 %v76
    %v122 = vunpack.c.l.b16 %v77
    %v123 = vunpack.c.l.b16 %v78
    %v124 = vunpack.c.l.b16 %v79
    %v125 = vunpack.c.l.b16 %v80
    %v126 = vunpack.c.l.b16 %v81
    %v127 = vunpack.c.l.b16 %v82
    %v128 = vunpack.c.l.b16 %v83
    %v129 = vunpack.c.l.b16 %v84
    %v130 = vunpack.c.l.b16 %v85
    %v131 = vunpack.c.l.b16 %v86
    %v132 = vunpack.c.l.b16 %v87
    %v133 = vunpack.c.l.b16 %v88
    %v134 = vpack.c.b16 %v119, %v118
    %v135 = vpack.c.b16 %v121, %v120
    %v136 = vpack.c.b16 %v123, %v122
    %v137 = vpack.c.b16 %v125, %v124
    %v138 = vpack.c.b16 %v127, %v126
    %v139 = vpack.c.b16 %v129, %v128
    %v140 = vpack.c.b16 %v131, %v130
    %v141 = vpack.c.b16 %v133, %v132
    %150 = vmatprep.subr.bf16.mxu0 0
    %151 = vmatpush1.bf16.msra.mxu0 %v134
    %152 = vmatprep.subr.bf16.mxu0 0
    %153 = vmatpush1.bf16.msra.mxu0 %v135
    %154 = vmatprep.subr.bf16.mxu0 0
    %155 = vmatpush1.bf16.msra.mxu0 %v136
    %156 = vmatprep.subr.bf16.mxu0 0
    %157 = vmatpush1.bf16.msra.mxu0 %v137
    %158 = vmatprep.subr.bf16.mxu0 0
    %159 = vmatpush1.bf16.msra.mxu0 %v138
    %160 = vmatprep.subr.bf16.mxu0 0
    %161 = vmatpush1.bf16.msra.mxu0 %v139
    %162 = vmatprep.subr.bf16.mxu0 0
    %163 = vmatpush1.bf16.msra.mxu0 %v140
    %164 = vmatprep.subr.bf16.mxu0 0
    %165 = vmatpush1.bf16.msra.mxu0 %v141
    %166 = vmatprep.subr.bf16.mxu0 0
    %167 = vmatpush1.bf16.msra.mxu0 0
    %168 = vmatprep.subr.bf16.mxu0 0
    %169 = vmatpush1.bf16.msra.mxu0 0
    %170 = vmatprep.subr.bf16.mxu0 0
    %171 = vmatpush1.bf16.msra.mxu0 0
    %172 = vmatprep.subr.bf16.mxu0 0
    %173 = vmatpush1.bf16.msra.mxu0 0
    %174 = vmatprep.subr.bf16.mxu0 0
    %175 = vmatpush1.bf16.msra.mxu0 0
    %176 = vmatprep.subr.bf16.mxu0 0
    %177 = vmatpush1.bf16.msra.mxu0 0
    %178 = vmatprep.subr.bf16.mxu0 0
    %179 = vmatpush1.bf16.msra.mxu0 0
    %180 = vmatprep.subr.bf16.mxu0 0
    %181 = vmatpush1.bf16.msra.mxu0 0
    %182 = vmatprep.mubr.bf16.mxu0 0
    %183 = vmatmul.mubr.bf16.gmra.mrb[0].mxu0 %v100
    %v184 = vpop.f32.mrb[0].mxu0
    %v185 = vadd.f32 %v94, %v184
    %v186 = vpop.f32.mrb[0].mxu0
    %v187 = vpop.f32.mrb[0].mxu0
    %v188 = vadd.f32 %v94, %v187
    %v189 = vpop.f32.mrb[0].mxu0
    %190 = vdwg.mxu0
    %v191 = vmax.f32 %v185, 0.0
    %v192 = vmax.f32 %v188, 0.0
    %v193 = vpack.c.bf16 %v192, %v191
    %v194 = vld [vmem:[#allocation8] sm:$0xf]
    %v195 = vld [vmem:[#allocation8 + $0x4] sm:$0xf]
    %v196 = vld [vmem:[#allocation8 + $0x8] sm:$0xf]
    %v197 = vld [vmem:[#allocation8 + $0xc] sm:$0xf]
    %v198 = vld [vmem:[#allocation8 + $0x10] sm:$0xf]
    %v199 = vld [vmem:[#allocation8 + $0x14] sm:$0xf]
    %v200 = vld [vmem:[#allocation8 + $0x18] sm:$0xf]
    %v201 = vld [vmem:[#allocation8 + $0x1c] sm:$0xf]
    %v202 = vld [vmem:[#allocation8 + $0x20] sm:$0xf]
    %v203 = vld [vmem:[#allocation8 + $0x24] sm:$0xf]
    %v204 = vld [vmem:[#allocation8 + $0x28] sm:$0xf]
    %v205 = vld [vmem:[#allocation8 + $0x2c] sm:$0xf]
    %v206 = vld [vmem:[#allocation8 + $0x30] sm:$0xf]
    %v207 = vld [vmem:[#allocation8 + $0x34] sm:$0xf]
    %v208 = vld [vmem:[#allocation8 + $0x38] sm:$0xf]
    %v209 = vld [vmem:[#allocation8 + $0x3c] sm:$0xf]
    %v210 = vld [vmem:[%s4] sm:$0x1]
    %v212 = vlaneseq
    %v213 = vshrl.u32 %v212, 7
    %v214 = vsub.s32 0, %v213
    %v215 = vrot.slane %v210, %v214
    %v233 = vunpack.c.l.b16 %v194
    %v234 = vunpack.c.l.b16 %v195
    %v235 = vunpack.c.l.b16 %v196
    %v236 = vunpack.c.l.b16 %v197
    %v237 = vunpack.c.l.b16 %v198
    %v238 = vunpack.c.l.b16 %v199
    %v239 = vunpack.c.l.b16 %v200
    %v240 = vunpack.c.l.b16 %v201
    %v241 = vunpack.c.l.b16 %v202
    %v242 = vunpack.c.l.b16 %v203
    %v243 = vunpack.c.l.b16 %v204
    %v244 = vunpack.c.l.b16 %v205
    %v245 = vunpack.c.l.b16 %v206
    %v246 = vunpack.c.l.b16 %v207
    %v247 = vunpack.c.l.b16 %v208
    %v248 = vunpack.c.l.b16 %v209
    %v249 = vpack.c.b16 %v234, %v233
    %v250 = vpack.c.b16 %v236, %v235
    %v251 = vpack.c.b16 %v238, %v237
    %v252 = vpack.c.b16 %v240, %v239
    %v253 = vpack.c.b16 %v242, %v241
    %v254 = vpack.c.b16 %v244, %v243
    %v255 = vpack.c.b16 %v246, %v245
    %v256 = vpack.c.b16 %v248, %v247
    %265 = vmatprep.subr.bf16.mxu0 0
    %266 = vmatpush1.bf16.msra.mxu0 %v249
    %267 = vmatprep.subr.bf16.mxu0 0
    %268 = vmatpush1.bf16.msra.mxu0 %v250
    %269 = vmatprep.subr.bf16.mxu0 0
    %270 = vmatpush1.bf16.msra.mxu0 %v251
    %271 = vmatprep.subr.bf16.mxu0 0
    %272 = vmatpush1.bf16.msra.mxu0 %v252
    %273 = vmatprep.subr.bf16.mxu0 0
    %274 = vmatpush1.bf16.msra.mxu0 %v253
    %275 = vmatprep.subr.bf16.mxu0 0
    %276 = vmatpush1.bf16.msra.mxu0 %v254
    %277 = vmatprep.subr.bf16.mxu0 0
    %278 = vmatpush1.bf16.msra.mxu0 %v255
    %279 = vmatprep.subr.bf16.mxu0 0
    %280 = vmatpush1.bf16.msra.mxu0 %v256
    %281 = vmatprep.subr.bf16.mxu0 0
    %282 = vmatpush1.bf16.msra.mxu0 0
    %283 = vmatprep.subr.bf16.mxu0 0
    %284 = vmatpush1.bf16.msra.mxu0 0
    %285 = vmatprep.subr.bf16.mxu0 0
    %286 = vmatpush1.bf16.msra.mxu0 0
    %287 = vmatprep.subr.bf16.mxu0 0
    %288 = vmatpush1.bf16.msra.mxu0 0
    %289 = vmatprep.subr.bf16.mxu0 0
    %290 = vmatpush1.bf16.msra.mxu0 0
    %291 = vmatprep.subr.bf16.mxu0 0
    %292 = vmatpush1.bf16.msra.mxu0 0
    %293 = vmatprep.subr.bf16.mxu0 0
    %294 = vmatpush1.bf16.msra.mxu0 0
    %295 = vmatprep.subr.bf16.mxu0 0
    %296 = vmatpush1.bf16.msra.mxu0 0
    %297 = vmatprep.mubr.bf16.mxu0 0
    %298 = vmatmul.mubr.bf16.gmra.mrb[0].mxu0 %v193
    %v299 = vpop.f32.mrb[0].mxu0
    %v300 = vadd.f32 %v215, %v299
    %v301 = vpop.f32.mrb[0].mxu0
    %v302 = vpop.f32.mrb[0].mxu0
    %v303 = vadd.f32 %v215, %v302
    %v304 = vpop.f32.mrb[0].mxu0
    %305 = vdwg.mxu0
    %v306 = vmax.f32 %v300, 0.0
    %v307 = vmax.f32 %v303, 0.0
    %v308 = vpack.c.bf16 %v307, %v306
    %v309 = vld [vmem:[%s5] sm:$0x1]
    %v310 = vld [vmem:[#allocation2] sm:$0x1]
    %312 = vset.pattern.permute.xlu0 0
    %313 = vperm.xlu0 %312, %v310
    %v314 = vpop.permute.xlu0 %313
    %v316 = vlaneseq
    %v317 = vshrl.u32 %v316, 7
    %v318 = vsub.s32 0, %v317
    %v319 = vrot.slane %v314, %v318
    %320 = vmatprep.subr.bf16.mxu0 0
    %321 = vmatpush1.bf16.xpose.msra.mxu0 %v308
    %322 = vmatprep.subr.bf16.mxu0 0
    %323 = vmatpush1.bf16.xpose.msra.mxu0 0
    %324 = vmatprep.subr.bf16.mxu0 0
    %325 = vmatpush1.bf16.xpose.msra.mxu0 0
    %326 = vmatprep.subr.bf16.mxu0 0
    %327 = vmatpush1.bf16.xpose.msra.mxu0 0
    %328 = vmatprep.subr.bf16.mxu0 0
    %329 = vmatpush1.bf16.xpose.msra.mxu0 0
    %330 = vmatprep.subr.bf16.mxu0 0
    %331 = vmatpush1.bf16.xpose.msra.mxu0 0
    %332 = vmatprep.subr.bf16.mxu0 0
    %333 = vmatpush1.bf16.xpose.msra.mxu0 0
    %334 = vmatprep.subr.bf16.mxu0 0
    %335 = vmatpush1.bf16.xpose.msra.mxu0 0
    %336 = vmatprep.subr.bf16.mxu0 0
    %337 = vmatpush1.bf16.xpose.msra.mxu0 0
    %338 = vmatprep.subr.bf16.mxu0 0
    %339 = vmatpush1.bf16.xpose.msra.mxu0 0
    %340 = vmatprep.subr.bf16.mxu0 0
    %341 = vmatpush1.bf16.xpose.msra.mxu0 0
    %342 = vmatprep.subr.bf16.mxu0 0
    %343 = vmatpush1.bf16.xpose.msra.mxu0 0
    %344 = vmatprep.subr.bf16.mxu0 0
    %345 = vmatpush1.bf16.xpose.msra.mxu0 0
    %346 = vmatprep.subr.bf16.mxu0 0
    %347 = vmatpush1.bf16.xpose.msra.mxu0 0
    %348 = vmatprep.subr.bf16.mxu0 0
    %349 = vmatpush1.bf16.xpose.msra.mxu0 0
    %350 = vmatprep.subr.bf16.mxu0 0
    %351 = vmatpush1.bf16.xpose.msra.mxu0 0
    %352 = vmatprep.mubr.bf16.mxu0 0
    %353 = vmatmul.mubr.bf16.gmra.mrb[0].mxu0 %v309
    %v354 = vpop.f32.mrb[0].mxu0
    %v355 = vadd.f32 %v319, %v354
    %v356 = vpop.f32.mrb[0].mxu0
    %v357 = vpop.f32.mrb[0].mxu0
    %v358 = vpop.f32.mrb[0].mxu0
    %359 = vdwg.mxu0
    %vm360 = vcmask 122880
    %361 = vst.msk [vmem:[#allocation9] sm:$0x1] %vm360, %v355
    // Predicated region
    $region42: #{tpu_custom_call.1} parent=1 // pred_check
      _
    $region43: #{tpu_custom_call.1} parent=1 // pred_check_branch
      %363 = sbr.rel (0) target = $region45
    $region44: #{tpu_custom_call.1} parent=1 // pred_region
      %s365 = ssub.s32 16, 16
      %366 = vsyncadd [#allocation5], %s365
      %s368 = sshll.u32 [#allocation9], 4
      %s369 = int_to_ptr.vmem [resolvable:$true] %s368
      %371 = dma.vmem_to_hbm [thread:$0]  %s369, 16, %s7, [#allocation5]
    $region45: #{tpu_custom_call.1} parent=1 // pred_fallthru
      _
    // Predicated region
    $region46: #{tpu_custom_call.1} parent=1 // pred_check
      _
    $region47: #{tpu_custom_call.1} parent=1 // pred_check_branch
      %373 = sbr.rel (0) target = $region49
    $region48: #{tpu_custom_call.1} parent=1 // pred_region
      %374 = dma.done [#allocation5], 16
    $region49: #{tpu_custom_call.1} parent=1 // pred_fallthru
      _
    %375 = vsyncpa [#allocation4], 1
    %376 = vsyncpa [#allocation7], 1
    %377 = vsyncpa [#allocation5], 1

</llo_original>
